<compile_context>
chip_gen: v5e
topology: v5e:2x2
jax: 0.10.0
libtpu: 0.0.40
codegen_flags: <defaults>
</compile_context>

<pallas_src>
import jax
import jax.numpy as jnp
from jax.experimental import pallas as pl
from jax.experimental.pallas import tpu as pltpu

IN_DIM = 451
H1, H2, H3 = 64, 128, 256
OUT_DIM = 3
OUT_PAD = 128              # lane-dense padded output width (multiple of 128)
BN_EPS = 1e-5
TILE_B_MAX = 2048          # batch rows per grid step (multiple of 8)
VMEM_LIMIT_BYTES = 32 * 1024 * 1024   # explicit (v5e default is only 16 MiB)


def _round_up(n, m):
    return (n + m - 1) // m * m


def _cdiv(a, b):
    return (a + b - 1) // b


def sensornet_kernel(x_ref,
                     w1_ref, b1_ref,
                     w2_ref, b2_ref,
                     w3_ref, b3_ref,
                     w4_ref, b4_ref,
                     out_ref):
    """One batch tile of the full MLP: 4 MXU matmuls + fused bias/ReLU.

    BatchNorm is pre-folded into W'/b' in the wrapper.  x arrives in f32 and
    is cast to bf16 here (saves a wrapper-side HBM rewrite of x); matmuls run
    with bf16 operands and f32 accumulation; the bias/ReLU epilogue is f32;
    the padded 128-wide output is stored lane-dense in bf16.
    """
    x = x_ref[...].astype(jnp.bfloat16)                                  # (TB, 451)

    h = jnp.dot(x, w1_ref[...], preferred_element_type=jnp.float32) + b1_ref[...]
    h = jnp.maximum(h, 0.0).astype(jnp.bfloat16)                         # (TB, 64)

    h = jnp.dot(h, w2_ref[...], preferred_element_type=jnp.float32) + b2_ref[...]
    h = jnp.maximum(h, 0.0).astype(jnp.bfloat16)                         # (TB, 128)

    h = jnp.dot(h, w3_ref[...], preferred_element_type=jnp.float32) + b3_ref[...]
    h = jnp.maximum(h, 0.0).astype(jnp.bfloat16)                         # (TB, 256)

    out = jnp.dot(h, w4_ref[...], preferred_element_type=jnp.float32) + b4_ref[...]
    out_ref[...] = out.astype(out_ref.dtype)                             # (TB, 128) bf16


def _fold_bn_into_linear(w, b, gamma, beta, mean, var):
    """Fold eval-mode BatchNorm1d into the preceding Linear's weight/bias."""
    scale = gamma / jnp.sqrt(var + BN_EPS)          # (C,)
    shift = beta - mean * scale                     # (C,)
    return w * scale[None, :], b * scale + shift


def sensornet_forward(x, params, tile_b_max=TILE_B_MAX):
    """Wrapper: fold BN, pad lanes, call the batch-tiled kernel."""
    (w1, b1, g1, be1, m1, v1,
     w2, b2, g2, be2, m2, v2,
     w3, b3, g3, be3, m3, v3,
     w4, b4) = params

    w1f, b1f = _fold_bn_into_linear(w1, b1, g1, be1, m1, v1)
    w2f, b2f = _fold_bn_into_linear(w2, b2, g2, be2, m2, v2)
    w3f, b3f = _fold_bn_into_linear(w3, b3, g3, be3, m3, v3)

    # Lane-dense output head: zero-pad the 3-wide final layer to 128 columns.
    w4p = jnp.zeros((H3, OUT_PAD), jnp.float32).at[:, :OUT_DIM].set(w4)
    b4p = jnp.zeros((OUT_PAD,), jnp.float32).at[:OUT_DIM].set(b4)

    batch = x.shape[0]
    # Pad the batch only to a multiple of 8 (sublane granularity), never to a
    # multiple of tile_b; the partial final block is handled by Pallas.
    b_pad = _round_up(batch, 8)
    if b_pad != batch:
        x = jnp.pad(x, ((0, b_pad - batch), (0, 0)))
    x = x.astype(jnp.float32)   # kernel casts to bf16 in VMEM (no HBM rewrite)

    # Choose the tile so large batches always yield >= 2 grid steps
    # (megacore sharding on v7x), capped at TILE_B_MAX for VMEM.
    tile_b = min(tile_b_max, max(8, _round_up(_cdiv(b_pad, 2), 8)))
    grid = (_cdiv(b_pad, tile_b),)

    operands = (
        x,
        w1f.astype(jnp.bfloat16), b1f[None, :].astype(jnp.float32),
        w2f.astype(jnp.bfloat16), b2f[None, :].astype(jnp.float32),
        w3f.astype(jnp.bfloat16), b3f[None, :].astype(jnp.float32),
        w4p.astype(jnp.bfloat16), b4p[None, :].astype(jnp.float32),
    )

    def resident(shape):
        # Same block every grid step -> DMA'd once, stays VMEM-resident.
        return pl.BlockSpec(shape, lambda i: (0, 0))

    in_specs = [
        pl.BlockSpec((tile_b, IN_DIM), lambda i: (i, 0)),   # streamed batch tile (f32)
        resident((IN_DIM, H1)), resident((1, H1)),
        resident((H1, H2)),     resident((1, H2)),
        resident((H2, H3)),     resident((1, H3)),
        resident((H3, OUT_PAD)), resident((1, OUT_PAD)),
    ]
    out_spec = pl.BlockSpec((tile_b, OUT_PAD), lambda i: (i, 0))

    # Advisory cost estimate: true batch, true (3-wide) head.
    flops = 2 * batch * (IN_DIM * H1 + H1 * H2 + H2 * H3 + H3 * OUT_DIM)
    param_bytes = sum(int(o.size) * o.dtype.itemsize for o in operands[1:])
    bytes_accessed = (batch * IN_DIM * 4          # x read (f32)
                      + param_bytes               # weights/biases
                      + batch * OUT_PAD * 2)      # bf16 padded output write

    out = pl.pallas_call(
        sensornet_kernel,
        out_shape=jax.ShapeDtypeStruct((b_pad, OUT_PAD), jnp.bfloat16),
        grid=grid,
        in_specs=in_specs,
        out_specs=out_spec,
        compiler_params=pltpu.CompilerParams(
            dimension_semantics=("parallel",),
            vmem_limit_bytes=VMEM_LIMIT_BYTES),
        cost_estimate=pl.CostEstimate(
            flops=flops, transcendentals=0, bytes_accessed=bytes_accessed),
    )(*operands)

    return out[:batch, :OUT_DIM].astype(jnp.float32)


def init_params(key):
    """Deterministic synthetic parameters (PyTorch-like uniform fan-in init)."""
    keys = jax.random.split(key, 20)
    it = iter(keys)

    def linear(fan_in, fan_out):
        bound = 1.0 / float(fan_in) ** 0.5
        w = jax.random.uniform(next(it), (fan_in, fan_out), jnp.float32, -bound, bound)
        b = jax.random.uniform(next(it), (fan_out,), jnp.float32, -bound, bound)
        return w, b

    def bn(c):
        gamma = 1.0 + 0.1 * jax.random.normal(next(it), (c,), jnp.float32)
        beta = 0.1 * jax.random.normal(next(it), (c,), jnp.float32)
        mean = 0.1 * jax.random.normal(next(it), (c,), jnp.float32)
        var = jnp.abs(jax.random.normal(next(it), (c,), jnp.float32)) + 0.5
        return gamma, beta, mean, var

    w1, b1 = linear(IN_DIM, H1)
    g1, be1, m1, v1 = bn(H1)
    w2, b2 = linear(H1, H2)
    g2, be2, m2, v2 = bn(H2)
    w3, b3 = linear(H2, H3)
    g3, be3, m3, v3 = bn(H3)
    w4, b4 = linear(H3, OUT_DIM)

    return (w1, b1, g1, be1, m1, v1,
            w2, b2, g2, be2, m2, v2,
            w3, b3, g3, be3, m3, v3,
            w4, b4)


def reference_forward(x, params):
    """Pure-JAX f32 reference (same eval-mode BN semantics)."""
    (w1, b1, g1, be1, m1, v1,
     w2, b2, g2, be2, m2, v2,
     w3, b3, g3, be3, m3, v3,
     w4, b4) = params

    def block(h, w, b, g, be, m, v):
        h = h @ w + b
        h = (h - m) / jnp.sqrt(v + BN_EPS) * g + be
        return jnp.maximum(h, 0.0)

    h = block(x, w1, b1, g1, be1, m1, v1)
    h = block(h, w2, b2, g2, be2, m2, v2)
    h = block(h, w3, b3, g3, be3, m3, v3)
    return h @ w4 + b4


if __name__ == "__main__":
    key = jax.random.PRNGKey(0)
    k_params, k_x = jax.random.split(key)

    batch = 10   # deliberately not a multiple of 8: exercises the pad-to-8 path
    x = jax.random.normal(k_x, (batch, IN_DIM), jnp.float32)
    params = init_params(k_params)

    out = jax.block_until_ready(sensornet_forward(x, params))
    ref = reference_forward(x, params)

    assert out.shape == (batch, OUT_DIM), out.shape
    # Kernel matmuls run in bf16 (f32 accumulation) with a bf16 output store:
    # compare against the pure f32 reference with a bf16-appropriate tolerance.
    max_err = float(jnp.max(jnp.abs(out - ref)))
    assert jnp.allclose(out, ref, atol=5e-2, rtol=5e-2), max_err

    print("KERNEL_OK")
</pallas_src>

<mosaic_0001>
module attributes {stable_mosaic.version = 11 : i64} {
  func.func @sensornet_kernel(%arg0: i32, %arg1: memref<8x451xf32, #tpu.memory_space<vmem>>, %arg2: memref<451x64xbf16, #tpu.memory_space<vmem>>, %arg3: memref<1x64xf32, #tpu.memory_space<vmem>>, %arg4: memref<64x128xbf16, #tpu.memory_space<vmem>>, %arg5: memref<1x128xf32, #tpu.memory_space<vmem>>, %arg6: memref<128x256xbf16, #tpu.memory_space<vmem>>, %arg7: memref<1x256xf32, #tpu.memory_space<vmem>>, %arg8: memref<256x128xbf16, #tpu.memory_space<vmem>>, %arg9: memref<1x128xf32, #tpu.memory_space<vmem>>, %arg10: memref<8x128xbf16, #tpu.memory_space<vmem>>) attributes {dimension_semantics = [#tpu.dimension_semantics<parallel>], iteration_bounds = array<i64: 2>, scalar_prefetch = 0 : i64, scratch_operands = 0 : i64, tpu.core_type = #tpu.core_type<tc>, window_params = [{transform_indices = @transform_0, window_bounds = array<i64: 8, 451>}, {pipeline_mode = #tpu.pipeline_mode<synchronous>, transform_indices = @transform_1, window_bounds = array<i64: 451, 64>}, {pipeline_mode = #tpu.pipeline_mode<synchronous>, transform_indices = @transform_2, window_bounds = array<i64: 1, 64>}, {pipeline_mode = #tpu.pipeline_mode<synchronous>, transform_indices = @transform_3, window_bounds = array<i64: 64, 128>}, {pipeline_mode = #tpu.pipeline_mode<synchronous>, transform_indices = @transform_4, window_bounds = array<i64: 1, 128>}, {pipeline_mode = #tpu.pipeline_mode<synchronous>, transform_indices = @transform_5, window_bounds = array<i64: 128, 256>}, {pipeline_mode = #tpu.pipeline_mode<synchronous>, transform_indices = @transform_6, window_bounds = array<i64: 1, 256>}, {pipeline_mode = #tpu.pipeline_mode<synchronous>, transform_indices = @transform_7, window_bounds = array<i64: 256, 128>}, {pipeline_mode = #tpu.pipeline_mode<synchronous>, transform_indices = @transform_8, window_bounds = array<i64: 1, 128>}, {transform_indices = @transform_9, window_bounds = array<i64: 8, 128>}]} {
    %c0 = arith.constant 0 : index
    %c0_0 = arith.constant 0 : index
    %0 = vector.load %arg1[%c0, %c0_0] : memref<8x451xf32, #tpu.memory_space<vmem>>, vector<8x451xf32>
    %1 = arith.truncf %0 : vector<8x451xf32> to vector<8x451xbf16>
    %c0_1 = arith.constant 0 : index
    %c0_2 = arith.constant 0 : index
    %2 = vector.load %arg2[%c0_1, %c0_2] : memref<451x64xbf16, #tpu.memory_space<vmem>>, vector<451x64xbf16>
    %cst = arith.constant dense<0.000000e+00> : vector<8x64xf32>
    %3 = tpu.matmul %1, %2, %cst {dimension_numbers = #tpu.dot_dimension_numbers<[1], [0], [0], [1], [0, 0, 1, 1], [], []>} : vector<8x451xbf16>, vector<451x64xbf16>, vector<8x64xf32> -> vector<8x64xf32>
    %c0_3 = arith.constant 0 : index
    %c0_4 = arith.constant 0 : index
    %4 = vector.load %arg3[%c0_3, %c0_4] : memref<1x64xf32, #tpu.memory_space<vmem>>, vector<1x64xf32>
    %5 = vector.broadcast %4 : vector<1x64xf32> to vector<8x64xf32>
    %6 = arith.addf %3, %5 : vector<8x64xf32>
    %cst_5 = arith.constant 0.000000e+00 : f32
    %7 = vector.broadcast %cst_5 : f32 to vector<8x64xf32>
    %8 = arith.maximumf %6, %7 : vector<8x64xf32>
    %9 = arith.truncf %8 : vector<8x64xf32> to vector<8x64xbf16>
    %c0_6 = arith.constant 0 : index
    %c0_7 = arith.constant 0 : index
    %10 = vector.load %arg4[%c0_6, %c0_7] : memref<64x128xbf16, #tpu.memory_space<vmem>>, vector<64x128xbf16>
    %cst_8 = arith.constant dense<0.000000e+00> : vector<8x128xf32>
    %11 = tpu.matmul %9, %10, %cst_8 {dimension_numbers = #tpu.dot_dimension_numbers<[1], [0], [0], [1], [0, 0, 1, 1], [], []>} : vector<8x64xbf16>, vector<64x128xbf16>, vector<8x128xf32> -> vector<8x128xf32>
    %c0_9 = arith.constant 0 : index
    %c0_10 = arith.constant 0 : index
    %12 = vector.load %arg5[%c0_9, %c0_10] : memref<1x128xf32, #tpu.memory_space<vmem>>, vector<1x128xf32>
    %13 = vector.broadcast %12 : vector<1x128xf32> to vector<8x128xf32>
    %14 = arith.addf %11, %13 : vector<8x128xf32>
    %cst_11 = arith.constant 0.000000e+00 : f32
    %15 = vector.broadcast %cst_11 : f32 to vector<8x128xf32>
    %16 = arith.maximumf %14, %15 : vector<8x128xf32>
    %17 = arith.truncf %16 : vector<8x128xf32> to vector<8x128xbf16>
    %c0_12 = arith.constant 0 : index
    %c0_13 = arith.constant 0 : index
    %18 = vector.load %arg6[%c0_12, %c0_13] : memref<128x256xbf16, #tpu.memory_space<vmem>>, vector<128x256xbf16>
    %cst_14 = arith.constant dense<0.000000e+00> : vector<8x256xf32>
    %19 = tpu.matmul %17, %18, %cst_14 {dimension_numbers = #tpu.dot_dimension_numbers<[1], [0], [0], [1], [0, 0, 1, 1], [], []>} : vector<8x128xbf16>, vector<128x256xbf16>, vector<8x256xf32> -> vector<8x256xf32>
    %c0_15 = arith.constant 0 : index
    %c0_16 = arith.constant 0 : index
    %20 = vector.load %arg7[%c0_15, %c0_16] : memref<1x256xf32, #tpu.memory_space<vmem>>, vector<1x256xf32>
    %21 = vector.broadcast %20 : vector<1x256xf32> to vector<8x256xf32>
    %22 = arith.addf %19, %21 : vector<8x256xf32>
    %cst_17 = arith.constant 0.000000e+00 : f32
    %23 = vector.broadcast %cst_17 : f32 to vector<8x256xf32>
    %24 = arith.maximumf %22, %23 : vector<8x256xf32>
    %25 = arith.truncf %24 : vector<8x256xf32> to vector<8x256xbf16>
    %c0_18 = arith.constant 0 : index
    %c0_19 = arith.constant 0 : index
    %26 = vector.load %arg8[%c0_18, %c0_19] : memref<256x128xbf16, #tpu.memory_space<vmem>>, vector<256x128xbf16>
    %cst_20 = arith.constant dense<0.000000e+00> : vector<8x128xf32>
    %27 = tpu.matmul %25, %26, %cst_20 {dimension_numbers = #tpu.dot_dimension_numbers<[1], [0], [0], [1], [0, 0, 1, 1], [], []>} : vector<8x256xbf16>, vector<256x128xbf16>, vector<8x128xf32> -> vector<8x128xf32>
    %c0_21 = arith.constant 0 : index
    %c0_22 = arith.constant 0 : index
    %28 = vector.load %arg9[%c0_21, %c0_22] : memref<1x128xf32, #tpu.memory_space<vmem>>, vector<1x128xf32>
    %29 = vector.broadcast %28 : vector<1x128xf32> to vector<8x128xf32>
    %30 = arith.addf %27, %29 : vector<8x128xf32>
    %31 = arith.truncf %30 : vector<8x128xf32> to vector<8x128xbf16>
    %c0_23 = arith.constant 0 : index
    %c0_24 = arith.constant 0 : index
    %32 = vector.load %arg10[%c0_23, %c0_24] : memref<8x128xbf16, #tpu.memory_space<vmem>>, vector<8x128xbf16>
    tpu.vector_store %arg10[%c0_23, %c0_24], %31 {strides = array<i32>} : memref<8x128xbf16, #tpu.memory_space<vmem>>, vector<8x128xbf16>,
    return
  }
  func.func @transform_0(%arg0: i32) -> (i32, i32) {
    %c0_i32 = arith.constant 0 : i32
    %c0_i32_0 = arith.constant 0 : i32
    return %arg0, %c0_i32 : i32, i32
  }
  func.func @transform_1(%arg0: i32) -> (i32, i32) {
    %c0_i32 = arith.constant 0 : i32
    %c0_i32_0 = arith.constant 0 : i32
    %c0_i32_1 = arith.constant 0 : i32
    return %c0_i32, %c0_i32_0 : i32, i32
  }
  func.func @transform_2(%arg0: i32) -> (i32, i32) {
    %c0_i32 = arith.constant 0 : i32
    %c0_i32_0 = arith.constant 0 : i32
    %c0_i32_1 = arith.constant 0 : i32
    return %c0_i32, %c0_i32_0 : i32, i32
  }
  func.func @transform_3(%arg0: i32) -> (i32, i32) {
    %c0_i32 = arith.constant 0 : i32
    %c0_i32_0 = arith.constant 0 : i32
    %c0_i32_1 = arith.constant 0 : i32
    return %c0_i32, %c0_i32_0 : i32, i32
  }
  func.func @transform_4(%arg0: i32) -> (i32, i32) {
    %c0_i32 = arith.constant 0 : i32
    %c0_i32_0 = arith.constant 0 : i32
    %c0_i32_1 = arith.constant 0 : i32
    return %c0_i32, %c0_i32_0 : i32, i32
  }
  func.func @transform_5(%arg0: i32) -> (i32, i32) {
    %c0_i32 = arith.constant 0 : i32
    %c0_i32_0 = arith.constant 0 : i32
    %c0_i32_1 = arith.constant 0 : i32
    return %c0_i32, %c0_i32_0 : i32, i32
  }
  func.func @transform_6(%arg0: i32) -> (i32, i32) {
    %c0_i32 = arith.constant 0 : i32
    %c0_i32_0 = arith.constant 0 : i32
    %c0_i32_1 = arith.constant 0 : i32
    return %c0_i32, %c0_i32_0 : i32, i32
  }
  func.func @transform_7(%arg0: i32) -> (i32, i32) {
    %c0_i32 = arith.constant 0 : i32
    %c0_i32_0 = arith.constant 0 : i32
    %c0_i32_1 = arith.constant 0 : i32
    return %c0_i32, %c0_i32_0 : i32, i32
  }
  func.func @transform_8(%arg0: i32) -> (i32, i32) {
    %c0_i32 = arith.constant 0 : i32
    %c0_i32_0 = arith.constant 0 : i32
    %c0_i32_1 = arith.constant 0 : i32
    return %c0_i32, %c0_i32_0 : i32, i32
  }
  func.func @transform_9(%arg0: i32) -> (i32, i32) {
    %c0_i32 = arith.constant 0 : i32
    %c0_i32_0 = arith.constant 0 : i32
    return %arg0, %c0_i32 : i32, i32
  }
}

</mosaic_0001>

<llo_original>
// kernel: tpu_custom_call.1
$region0: #{tpu_custom_call.1}
  #allocation0 [shape = 'u32[]', space=smem, size = 0x4, offset = 0x4, fixed_abs, tag = 'smem constant byte address 0x4 - core index']
  #allocation1 [shape = 'u32[72,128]{1,0:T(1,128)}', space=vmem, size = 0x9000, scoped, tag = 'internal scratch']
  %s0 = inlined_call_operand.vmem [shape: f32[16,451], index: 0, kind: input, shape index: {}]
  %s1 = inlined_call_operand.vmem [shape: bf16[451,64], index: 1, kind: input, shape index: {}]
  %s2 = inlined_call_operand.vmem [shape: f32[1,64], index: 2, kind: input, shape index: {}]
  %s3 = inlined_call_operand.vmem [shape: bf16[64,128], index: 3, kind: input, shape index: {}]
  %s4 = inlined_call_operand.vmem [shape: f32[1,128], index: 4, kind: input, shape index: {}]
  %s5 = inlined_call_operand.vmem [shape: bf16[128,256], index: 5, kind: input, shape index: {}]
  %s6 = inlined_call_operand.vmem [shape: f32[1,256], index: 6, kind: input, shape index: {}]
  %s7 = inlined_call_operand.vmem [shape: bf16[256,128], index: 7, kind: input, shape index: {}]
  %s8 = inlined_call_operand.vmem [shape: f32[1,128], index: 8, kind: input, shape index: {}]
  %s9 = inlined_call_operand.hbm [shape: bf16[16,128], index: 9, kind: output, shape index: {}]
  %s10 = sld [smem:[#allocation0]]
  $region69: #{tpu_custom_call.1} parent=0
    _
  %s12 = ssub.s32 1, %s10
  %s13 = scalar_select 0, %s12, %s10
  $region1: #{tpu_custom_call.1} parent=0
    #allocation2 [shape = 'u8[4096]{0}', space=vmem, size = 0x1000, scoped, tag = 'output window, operand 0']
    #allocation3 [shape = 's32[2]{0}', space=sflag, size = 0x8, scoped, tag = 'scoped memory for tpu_custom_call.1']
    %14 = vsyncpa [#allocation3], 0
    %s15 = scalar_lea.sflag [#allocation3], 1
    %16 = vsyncpa %s15, 0
    loop: start=0, step=1, limit=4
    $region2: #{tpu_custom_call.1} parent=1 // loop_pre_header
      _
    $region3: #{tpu_custom_call.1} parent=1 // loop_header
      %s18 = sphi 0, %s22
      %p19 = scmp.ge.s32.totalorder %s18, 4
      %s28 = sphi 0, %s30
      %s31 = sphi 0, %s28
      %s32 = sphi 0, %s31
      %s48 = sphi 0, %s32
      %s52 = sphi 0, %s52
      %s54 = sphi 0, %s52
      %s55 = sphi 0, %s54
      %s69 = sphi 0, %s55
      %s73 = sphi 0, %s73
      %s75 = sphi 0, %s73
      %s76 = sphi 0, %s75
      %s90 = sphi 0, %s76
      %s94 = sphi 0, %s94
      %s96 = sphi 0, %s94
      %s97 = sphi 0, %s96
      %s111 = sphi 0, %s97
      %s115 = sphi 0, %s115
      %s117 = sphi 0, %s115
      %s118 = sphi 0, %s117
      %s132 = sphi 0, %s118
      %s136 = sphi 0, %s136
      %s138 = sphi 0, %s136
      %s139 = sphi 0, %s138
      %s153 = sphi 0, %s139
      %s157 = sphi 0, %s157
      %s159 = sphi 0, %s157
      %s160 = sphi 0, %s159
      %s174 = sphi 0, %s160
      %s178 = sphi 0, %s178
      %s180 = sphi 0, %s178
      %s181 = sphi 0, %s180
      %s195 = sphi 0, %s181
      %s199 = sphi 0, %s199
      %s201 = sphi 0, %s199
      %s202 = sphi 0, %s201
      %s216 = sphi 0, %s202
      %s222 = sphi 0, %s224
      %s225 = sphi 0, %s222
      %s226 = sphi 0, %s225
      %s242 = sphi 0, %s226
    $region4: #{tpu_custom_call.1} parent=1 // loop_header_branch
      %21 = sbr.rel (%p19) target = $region8
    $region5: #{tpu_custom_call.1} parent=1 // loop_body
      %s23 = ssub.s32 %s18, 1
      %s24 = ssub.s32 %s18, 2
      %s25 = sadd.s32 %s18, 1
      %s26 = ssub.s32 %s18, %s25
      %p27 = scmp.eq.s32.totalorder %s26, 0
      %s29 = sadd.s32 %s28, 1
      %s30 = scalar_select %p27, %s28, %s29
      %p33 = pneg %p27
      %p34 = scmp.eq.s32.totalorder %s18, 1
      %p35 = por %p33, %p34
      %p36 = scmp.ne.s32.totalorder %s28, %s31
      %p37 = scmp.eq.s32.totalorder %s18, 0
      %p38 = por %p36, %p37
      %p39 = scmp.ne.s32.totalorder %s28, %s31
      %p40 = scmp.eq.s32.totalorder %s23, 1
      %p41 = por %p39, %p40
      %p42 = scmp.ne.s32.totalorder %s31, %s32
      %p43 = scmp.eq.s32.totalorder %s23, 0
      %p44 = por %p42, %p43
      %p45 = scmp.ne.s32.totalorder %s31, %s32
      %p46 = scmp.eq.s32.totalorder %s24, 1
      %p47 = por %p45, %p46
      %p49 = scmp.ne.s32.totalorder %s32, %s48
      %p50 = scmp.eq.s32.totalorder %s24, 0
      %p51 = por %p49, %p50
      %s53 = sadd.s32 %s52, 1
      %p56 = scmp.eq.s32.totalorder %s18, 1
      %p57 = scmp.ne.s32.totalorder %s52, %s54
      %p58 = scmp.eq.s32.totalorder %s18, 0
      %p59 = por %p57, %p58
      %p60 = scmp.ne.s32.totalorder %s52, %s54
      %p61 = scmp.eq.s32.totalorder %s23, 1
      %p62 = por %p60, %p61
      %p63 = scmp.ne.s32.totalorder %s54, %s55
      %p64 = scmp.eq.s32.totalorder %s23, 0
      %p65 = por %p63, %p64
      %p66 = scmp.ne.s32.totalorder %s54, %s55
      %p67 = scmp.eq.s32.totalorder %s24, 1
      %p68 = por %p66, %p67
      %p70 = scmp.ne.s32.totalorder %s55, %s69
      %p71 = scmp.eq.s32.totalorder %s24, 0
      %p72 = por %p70, %p71
      %s74 = sadd.s32 %s73, 1
      %p77 = scmp.eq.s32.totalorder %s18, 1
      %p78 = scmp.ne.s32.totalorder %s73, %s75
      %p79 = scmp.eq.s32.totalorder %s18, 0
      %p80 = por %p78, %p79
      %p81 = scmp.ne.s32.totalorder %s73, %s75
      %p82 = scmp.eq.s32.totalorder %s23, 1
      %p83 = por %p81, %p82
      %p84 = scmp.ne.s32.totalorder %s75, %s76
      %p85 = scmp.eq.s32.totalorder %s23, 0
      %p86 = por %p84, %p85
      %p87 = scmp.ne.s32.totalorder %s75, %s76
      %p88 = scmp.eq.s32.totalorder %s24, 1
      %p89 = por %p87, %p88
      %p91 = scmp.ne.s32.totalorder %s76, %s90
      %p92 = scmp.eq.s32.totalorder %s24, 0
      %p93 = por %p91, %p92
      %s95 = sadd.s32 %s94, 1
      %p98 = scmp.eq.s32.totalorder %s18, 1
      %p99 = scmp.ne.s32.totalorder %s94, %s96
      %p100 = scmp.eq.s32.totalorder %s18, 0
      %p101 = por %p99, %p100
      %p102 = scmp.ne.s32.totalorder %s94, %s96
      %p103 = scmp.eq.s32.totalorder %s23, 1
      %p104 = por %p102, %p103
      %p105 = scmp.ne.s32.totalorder %s96, %s97
      %p106 = scmp.eq.s32.totalorder %s23, 0
      %p107 = por %p105, %p106
      %p108 = scmp.ne.s32.totalorder %s96, %s97
      %p109 = scmp.eq.s32.totalorder %s24, 1
      %p110 = por %p108, %p109
      %p112 = scmp.ne.s32.totalorder %s97, %s111
      %p113 = scmp.eq.s32.totalorder %s24, 0
      %p114 = por %p112, %p113
      %s116 = sadd.s32 %s115, 1
      %p119 = scmp.eq.s32.totalorder %s18, 1
      %p120 = scmp.ne.s32.totalorder %s115, %s117
      %p121 = scmp.eq.s32.totalorder %s18, 0
      %p122 = por %p120, %p121
      %p123 = scmp.ne.s32.totalorder %s115, %s117
      %p124 = scmp.eq.s32.totalorder %s23, 1
      %p125 = por %p123, %p124
      %p126 = scmp.ne.s32.totalorder %s117, %s118
      %p127 = scmp.eq.s32.totalorder %s23, 0
      %p128 = por %p126, %p127
      %p129 = scmp.ne.s32.totalorder %s117, %s118
      %p130 = scmp.eq.s32.totalorder %s24, 1
      %p131 = por %p129, %p130
      %p133 = scmp.ne.s32.totalorder %s118, %s132
      %p134 = scmp.eq.s32.totalorder %s24, 0
      %p135 = por %p133, %p134
      %s137 = sadd.s32 %s136, 1
      %p140 = scmp.eq.s32.totalorder %s18, 1
      %p141 = scmp.ne.s32.totalorder %s136, %s138
      %p142 = scmp.eq.s32.totalorder %s18, 0
      %p143 = por %p141, %p142
      %p144 = scmp.ne.s32.totalorder %s136, %s138
      %p145 = scmp.eq.s32.totalorder %s23, 1
      %p146 = por %p144, %p145
      %p147 = scmp.ne.s32.totalorder %s138, %s139
      %p148 = scmp.eq.s32.totalorder %s23, 0
      %p149 = por %p147, %p148
      %p150 = scmp.ne.s32.totalorder %s138, %s139
      %p151 = scmp.eq.s32.totalorder %s24, 1
      %p152 = por %p150, %p151
      %p154 = scmp.ne.s32.totalorder %s139, %s153
      %p155 = scmp.eq.s32.totalorder %s24, 0
      %p156 = por %p154, %p155
      %s158 = sadd.s32 %s157, 1
      %p161 = scmp.eq.s32.totalorder %s18, 1
      %p162 = scmp.ne.s32.totalorder %s157, %s159
      %p163 = scmp.eq.s32.totalorder %s18, 0
      %p164 = por %p162, %p163
      %p165 = scmp.ne.s32.totalorder %s157, %s159
      %p166 = scmp.eq.s32.totalorder %s23, 1
      %p167 = por %p165, %p166
      %p168 = scmp.ne.s32.totalorder %s159, %s160
      %p169 = scmp.eq.s32.totalorder %s23, 0
      %p170 = por %p168, %p169
      %p171 = scmp.ne.s32.totalorder %s159, %s160
      %p172 = scmp.eq.s32.totalorder %s24, 1
      %p173 = por %p171, %p172
      %p175 = scmp.ne.s32.totalorder %s160, %s174
      %p176 = scmp.eq.s32.totalorder %s24, 0
      %p177 = por %p175, %p176
      %s179 = sadd.s32 %s178, 1
      %p182 = scmp.eq.s32.totalorder %s18, 1
      %p183 = scmp.ne.s32.totalorder %s178, %s180
      %p184 = scmp.eq.s32.totalorder %s18, 0
      %p185 = por %p183, %p184
      %p186 = scmp.ne.s32.totalorder %s178, %s180
      %p187 = scmp.eq.s32.totalorder %s23, 1
      %p188 = por %p186, %p187
      %p189 = scmp.ne.s32.totalorder %s180, %s181
      %p190 = scmp.eq.s32.totalorder %s23, 0
      %p191 = por %p189, %p190
      %p192 = scmp.ne.s32.totalorder %s180, %s181
      %p193 = scmp.eq.s32.totalorder %s24, 1
      %p194 = por %p192, %p193
      %p196 = scmp.ne.s32.totalorder %s181, %s195
      %p197 = scmp.eq.s32.totalorder %s24, 0
      %p198 = por %p196, %p197
      %s200 = sadd.s32 %s199, 1
      %p203 = scmp.eq.s32.totalorder %s18, 1
      %p204 = scmp.ne.s32.totalorder %s199, %s201
      %p205 = scmp.eq.s32.totalorder %s18, 0
      %p206 = por %p204, %p205
      %p207 = scmp.ne.s32.totalorder %s199, %s201
      %p208 = scmp.eq.s32.totalorder %s23, 1
      %p209 = por %p207, %p208
      %p210 = scmp.ne.s32.totalorder %s201, %s202
      %p211 = scmp.eq.s32.totalorder %s23, 0
      %p212 = por %p210, %p211
      %p213 = scmp.ne.s32.totalorder %s201, %s202
      %p214 = scmp.eq.s32.totalorder %s24, 1
      %p215 = por %p213, %p214
      %p217 = scmp.ne.s32.totalorder %s202, %s216
      %p218 = scmp.eq.s32.totalorder %s24, 0
      %p219 = por %p217, %p218
      %s220 = ssub.s32 %s18, %s25
      %p221 = scmp.eq.s32.totalorder %s220, 0
      %s223 = sadd.s32 %s222, 1
      %s224 = scalar_select %p221, %s222, %s223
      %p227 = pneg %p221
      %p228 = scmp.eq.s32.totalorder %s18, 1
      %p229 = por %p227, %p228
      %p230 = scmp.ne.s32.totalorder %s222, %s225
      %p231 = scmp.eq.s32.totalorder %s18, 0
      %p232 = por %p230, %p231
      %p233 = scmp.ne.s32.totalorder %s222, %s225
      %p234 = scmp.eq.s32.totalorder %s23, 1
      %p235 = por %p233, %p234
      %p236 = scmp.ne.s32.totalorder %s225, %s226
      %p237 = scmp.eq.s32.totalorder %s23, 0
      %p238 = por %p236, %p237
      %p239 = scmp.ne.s32.totalorder %s225, %s226
      %p240 = scmp.eq.s32.totalorder %s24, 1
      %p241 = por %p239, %p240
      %p243 = scmp.ne.s32.totalorder %s226, %s242
      %p244 = scmp.eq.s32.totalorder %s24, 0
      %p245 = por %p243, %p244
      %p246 = scmp.le.s32.totalorder 1, %s18
      %p247 = scmp.lt.s32.totalorder %s18, 3
      %p248 = pnand %p246, %p247
      %p249 = pneg %p248
      // Predicated region
      $region9: #{tpu_custom_call.1} parent=5 // pred_check
        _
      $region10: #{tpu_custom_call.1} parent=5 // pred_check_branch
        %251 = sbr.rel (%p248) target = $region12
      $region11: #{tpu_custom_call.1} parent=5 // pred_region
        %s252 = ssub.s32 %s18, 1
        // Predicated region
        $region13: #{tpu_custom_call.1} parent=11 // pred_check
          %p253 = pneg %p65
        $region14: #{tpu_custom_call.1} parent=11 // pred_check_branch
          %255 = sbr.rel (%p253) target = $region16
        $region15: #{tpu_custom_call.1} parent=11 // pred_region
          _
        $region16: #{tpu_custom_call.1} parent=11 // pred_fallthru
          _
        // Predicated region
        $region17: #{tpu_custom_call.1} parent=11 // pred_check
          %p256 = pneg %p86
        $region18: #{tpu_custom_call.1} parent=11 // pred_check_branch
          %258 = sbr.rel (%p256) target = $region20
        $region19: #{tpu_custom_call.1} parent=11 // pred_region
          _
        $region20: #{tpu_custom_call.1} parent=11 // pred_fallthru
          _
        // Predicated region
        $region21: #{tpu_custom_call.1} parent=11 // pred_check
          %p259 = pneg %p107
        $region22: #{tpu_custom_call.1} parent=11 // pred_check_branch
          %261 = sbr.rel (%p259) target = $region24
        $region23: #{tpu_custom_call.1} parent=11 // pred_region
          _
        $region24: #{tpu_custom_call.1} parent=11 // pred_fallthru
          _
        // Predicated region
        $region25: #{tpu_custom_call.1} parent=11 // pred_check
          %p262 = pneg %p128
        $region26: #{tpu_custom_call.1} parent=11 // pred_check_branch
          %264 = sbr.rel (%p262) target = $region28
        $region27: #{tpu_custom_call.1} parent=11 // pred_region
          _
        $region28: #{tpu_custom_call.1} parent=11 // pred_fallthru
          _
        // Predicated region
        $region29: #{tpu_custom_call.1} parent=11 // pred_check
          %p265 = pneg %p149
        $region30: #{tpu_custom_call.1} parent=11 // pred_check_branch
          %267 = sbr.rel (%p265) target = $region32
        $region31: #{tpu_custom_call.1} parent=11 // pred_region
          _
        $region32: #{tpu_custom_call.1} parent=11 // pred_fallthru
          _
        // Predicated region
        $region33: #{tpu_custom_call.1} parent=11 // pred_check
          %p268 = pneg %p170
        $region34: #{tpu_custom_call.1} parent=11 // pred_check_branch
          %270 = sbr.rel (%p268) target = $region36
        $region35: #{tpu_custom_call.1} parent=11 // pred_region
          _
        $region36: #{tpu_custom_call.1} parent=11 // pred_fallthru
          _
        // Predicated region
        $region37: #{tpu_custom_call.1} parent=11 // pred_check
          %p271 = pneg %p191
        $region38: #{tpu_custom_call.1} parent=11 // pred_check_branch
          %273 = sbr.rel (%p271) target = $region40
        $region39: #{tpu_custom_call.1} parent=11 // pred_region
          _
        $region40: #{tpu_custom_call.1} parent=11 // pred_fallthru
          _
        // Predicated region
        $region41: #{tpu_custom_call.1} parent=11 // pred_check
          %p274 = pneg %p212
        $region42: #{tpu_custom_call.1} parent=11 // pred_check_branch
          %276 = sbr.rel (%p274) target = $region44
        $region43: #{tpu_custom_call.1} parent=11 // pred_region
          _
        $region44: #{tpu_custom_call.1} parent=11 // pred_fallthru
          _
      $region12: #{tpu_custom_call.1} parent=5 // pred_fallthru
        _
      %p277 = scmp.lt.s32.totalorder %s18, 2
      // Predicated region
      $region45: #{tpu_custom_call.1} parent=5 // pred_check
        %p278 = pneg %p277
      $region46: #{tpu_custom_call.1} parent=5 // pred_check_branch
        %280 = sbr.rel (%p278) target = $region48
      $region47: #{tpu_custom_call.1} parent=5 // pred_region
        // Predicated region
        $region49: #{tpu_custom_call.1} parent=47 // pred_check
          %p281 = pneg %p38
        $region50: #{tpu_custom_call.1} parent=47 // pred_check_branch
          %283 = sbr.rel (%p281) target = $region52
        $region51: #{tpu_custom_call.1} parent=47 // pred_region
          %p284 = scmp.lt.s32.totalorder %s18, 1
          %s285 = scalar_select %p284, %s18, 1
          %s286 = smul.addr %s285, 4
          %s287 = smul.addr %s286, 8
          %s288 = scalar_lea.vmem %s0, %s287
        $region52: #{tpu_custom_call.1} parent=47 // pred_fallthru
          _
      $region48: #{tpu_custom_call.1} parent=5 // pred_fallthru
        _
      %p289 = scmp.le.s32.totalorder 1, %s18
      %p290 = scmp.lt.s32.totalorder %s18, 3
      %p291 = pnand %p289, %p290
      %p292 = pneg %p291
      // Predicated region
      $region53: #{tpu_custom_call.1} parent=5 // pred_check
        _
      $region54: #{tpu_custom_call.1} parent=5 // pred_check_branch
        %294 = sbr.rel (%p291) target = $region56
      $region55: #{tpu_custom_call.1} parent=5 // pred_region
        %s295 = ssub.s32 %s18, 1
        %p296 = scmp.lt.s32.totalorder %s23, 1
        %s297 = scalar_select %p296, %s23, 1
        %s298 = smul.addr %s297, 4
        %s299 = smul.addr %s298, 8
        %s300 = scalar_lea.vmem %s0, %s299
        %p301 = pneg %p44
        %p302 = pneg %p41
        %p303 = pneg %p65
        %p304 = pneg %p62
        %p305 = pneg %p86
        %p306 = pneg %p83
        %p307 = pneg %p107
        %p308 = pneg %p104
        %p309 = pneg %p128
        %p310 = pneg %p125
        %p311 = pneg %p149
        %p312 = pneg %p146
        %p313 = pneg %p170
        %p314 = pneg %p167
        %p315 = pneg %p191
        %p316 = pneg %p188
        %p317 = pneg %p212
        %p318 = pneg %p209
        %p319 = pneg %p238
        %p320 = pneg %p235
        %s321 = sand.u32 %s225, 1
        %s322 = scalar_lea.sflag [#allocation3], %s321
        %s323 = sand.u32 %s225, 1
        %s324 = smul.addr %s323, 4
        %s325 = scalar_lea.vmem [#allocation2], %s324
        %p326 = scmp.lt.s32.totalorder %s23, 1
        %s327 = scalar_select %p326, %s23, 1
        %s328 = smul.addr %s327, 4
        %s329 = smul.addr %s328, 8
        %s330 = scalar_lea.vmem %s0, %s329
        %v332 = vld [vmem:[%s330] sm:$0xff]
        %v333 = vld [vmem:[%s330 + $0x8] sm:$0xff]
        %v334 = vld [vmem:[%s330 + $0x10] sm:$0xff]
        %v335 = vld [vmem:[%s330 + $0x18] sm:$0xff]
        %v336 = vpack.c.bf16 %v332, %v332
        %v337 = vpack.c.bf16 %v333, %v333
        %v338 = vpack.c.bf16 %v334, %v334
        %v339 = vpack.c.bf16 %v335, %v335
        %v340 = vld [vmem:[%s1] sm:$0xf]
        %v341 = vld [vmem:[%s1 + $0x4] sm:$0xf]
        %v342 = vld [vmem:[%s1 + $0x8] sm:$0xf]
        %v343 = vld [vmem:[%s1 + $0xc] sm:$0xf]
        %v344 = vld [vmem:[%s1 + $0x10] sm:$0xf]
        %v345 = vld [vmem:[%s1 + $0x14] sm:$0xf]
        %v346 = vld [vmem:[%s1 + $0x18] sm:$0xf]
        %v347 = vld [vmem:[%s1 + $0x1c] sm:$0xf]
        %v348 = vld [vmem:[%s1 + $0x20] sm:$0xf]
        %v349 = vld [vmem:[%s1 + $0x24] sm:$0xf]
        %v350 = vld [vmem:[%s1 + $0x28] sm:$0xf]
        %v351 = vld [vmem:[%s1 + $0x2c] sm:$0xf]
        %v352 = vld [vmem:[%s1 + $0x30] sm:$0xf]
        %v353 = vld [vmem:[%s1 + $0x34] sm:$0xf]
        %v354 = vld [vmem:[%s1 + $0x38] sm:$0xf]
        %v355 = vld [vmem:[%s1 + $0x3c] sm:$0xf]
        %v356 = vld [vmem:[%s1 + $0x40] sm:$0xf]
        %v357 = vld [vmem:[%s1 + $0x44] sm:$0xf]
        %v358 = vld [vmem:[%s1 + $0x48] sm:$0xf]
        %v359 = vld [vmem:[%s1 + $0x4c] sm:$0xf]
        %v360 = vld [vmem:[%s1 + $0x50] sm:$0xf]
        %v361 = vld [vmem:[%s1 + $0x54] sm:$0xf]
        %v362 = vld [vmem:[%s1 + $0x58] sm:$0xf]
        %v363 = vld [vmem:[%s1 + $0x5c] sm:$0xf]
        %v364 = vld [vmem:[%s1 + $0x60] sm:$0xf]
        %v365 = vld [vmem:[%s1 + $0x64] sm:$0xf]
        %v366 = vld [vmem:[%s1 + $0x68] sm:$0xf]
        %v367 = vld [vmem:[%s1 + $0x6c] sm:$0xf]
        %v368 = vld [vmem:[%s1 + $0x70] sm:$0xf]
        %v369 = vld [vmem:[%s1 + $0x74] sm:$0xf]
        %v370 = vld [vmem:[%s1 + $0x78] sm:$0xf]
        %v371 = vld [vmem:[%s1 + $0x7c] sm:$0xf]
        %v372 = vld [vmem:[%s1 + $0x80] sm:$0xf]
        %v373 = vld [vmem:[%s1 + $0x84] sm:$0xf]
        %v374 = vld [vmem:[%s1 + $0x88] sm:$0xf]
        %v375 = vld [vmem:[%s1 + $0x8c] sm:$0xf]
        %v376 = vld [vmem:[%s1 + $0x90] sm:$0xf]
        %v377 = vld [vmem:[%s1 + $0x94] sm:$0xf]
        %v378 = vld [vmem:[%s1 + $0x98] sm:$0xf]
        %v379 = vld [vmem:[%s1 + $0x9c] sm:$0xf]
        %v380 = vld [vmem:[%s1 + $0xa0] sm:$0xf]
        %v381 = vld [vmem:[%s1 + $0xa4] sm:$0xf]
        %v382 = vld [vmem:[%s1 + $0xa8] sm:$0xf]
        %v383 = vld [vmem:[%s1 + $0xac] sm:$0xf]
        %v384 = vld [vmem:[%s1 + $0xb0] sm:$0xf]
        %v385 = vld [vmem:[%s1 + $0xb4] sm:$0xf]
        %v386 = vld [vmem:[%s1 + $0xb8] sm:$0xf]
        %v387 = vld [vmem:[%s1 + $0xbc] sm:$0xf]
        %v388 = vld [vmem:[%s1 + $0xc0] sm:$0xf]
        %v389 = vld [vmem:[%s1 + $0xc4] sm:$0xf]
        %v390 = vld [vmem:[%s1 + $0xc8] sm:$0xf]
        %v391 = vld [vmem:[%s1 + $0xcc] sm:$0xf]
        %v392 = vld [vmem:[%s1 + $0xd0] sm:$0xf]
        %v393 = vld [vmem:[%s1 + $0xd4] sm:$0xf]
        %v394 = vld [vmem:[%s1 + $0xd8] sm:$0xf]
        %v395 = vld [vmem:[%s1 + $0xdc] sm:$0xf]
        %v396 = vld [vmem:[%s1 + $0xe0] sm:$0x3]
        %v397 = vld [vmem:[%s2] sm:$0x1]
        %v399 = vperm.slane %v397, 0
        %v458 = vunpack.c.l.b16 %v340
        %v459 = vunpack.c.l.b16 %v341
        %v460 = vunpack.c.l.b16 %v342
        %v461 = vunpack.c.l.b16 %v343
        %v462 = vunpack.c.l.b16 %v344
        %v463 = vunpack.c.l.b16 %v345
        %v464 = vunpack.c.l.b16 %v346
        %v465 = vunpack.c.l.b16 %v347
        %v466 = vunpack.c.l.b16 %v348
        %v467 = vunpack.c.l.b16 %v349
        %v468 = vunpack.c.l.b16 %v350
        %v469 = vunpack.c.l.b16 %v351
        %v470 = vunpack.c.l.b16 %v352
        %v471 = vunpack.c.l.b16 %v353
        %v472 = vunpack.c.l.b16 %v354
        %v473 = vunpack.c.l.b16 %v355
        %v474 = vunpack.c.l.b16 %v356
        %v475 = vunpack.c.l.b16 %v357
        %v476 = vunpack.c.l.b16 %v358
        %v477 = vunpack.c.l.b16 %v359
        %v478 = vunpack.c.l.b16 %v360
        %v479 = vunpack.c.l.b16 %v361
        %v480 = vunpack.c.l.b16 %v362
        %v481 = vunpack.c.l.b16 %v363
        %v482 = vunpack.c.l.b16 %v364
        %v483 = vunpack.c.l.b16 %v365
        %v484 = vunpack.c.l.b16 %v366
        %v485 = vunpack.c.l.b16 %v367
        %v486 = vunpack.c.l.b16 %v368
        %v487 = vunpack.c.l.b16 %v369
        %v488 = vunpack.c.l.b16 %v370
        %v489 = vunpack.c.l.b16 %v371
        %v490 = vunpack.c.l.b16 %v372
        %v491 = vunpack.c.l.b16 %v373
        %v492 = vunpack.c.l.b16 %v374
        %v493 = vunpack.c.l.b16 %v375
        %v494 = vunpack.c.l.b16 %v376
        %v495 = vunpack.c.l.b16 %v377
        %v496 = vunpack.c.l.b16 %v378
        %v497 = vunpack.c.l.b16 %v379
        %v498 = vunpack.c.l.b16 %v380
        %v499 = vunpack.c.l.b16 %v381
        %v500 = vunpack.c.l.b16 %v382
        %v501 = vunpack.c.l.b16 %v383
        %v502 = vunpack.c.l.b16 %v384
        %v503 = vunpack.c.l.b16 %v385
        %v504 = vunpack.c.l.b16 %v386
        %v505 = vunpack.c.l.b16 %v387
        %v506 = vunpack.c.l.b16 %v388
        %v507 = vunpack.c.l.b16 %v389
        %v508 = vunpack.c.l.b16 %v390
        %v509 = vunpack.c.l.b16 %v391
        %v510 = vunpack.c.l.b16 %v392
        %v511 = vunpack.c.l.b16 %v393
        %v512 = vunpack.c.l.b16 %v394
        %v513 = vunpack.c.l.b16 %v395
        %v514 = vunpack.c.l.b16 %v396
        %v515 = vpack.c.b16 %v459, %v458
        %v516 = vpack.c.b16 %v461, %v460
        %v517 = vpack.c.b16 %v463, %v462
        %v518 = vpack.c.b16 %v465, %v464
        %v519 = vpack.c.b16 %v467, %v466
        %v520 = vpack.c.b16 %v469, %v468
        %v521 = vpack.c.b16 %v471, %v470
        %v522 = vpack.c.b16 %v473, %v472
        %v523 = vpack.c.b16 %v475, %v474
        %v524 = vpack.c.b16 %v477, %v476
        %v525 = vpack.c.b16 %v479, %v478
        %v526 = vpack.c.b16 %v481, %v480
        %v527 = vpack.c.b16 %v483, %v482
        %v528 = vpack.c.b16 %v485, %v484
        %v529 = vpack.c.b16 %v487, %v486
        %v530 = vpack.c.b16 %v489, %v488
        %v531 = vpack.c.b16 %v491, %v490
        %v532 = vpack.c.b16 %v493, %v492
        %v533 = vpack.c.b16 %v495, %v494
        %v534 = vpack.c.b16 %v497, %v496
        %v535 = vpack.c.b16 %v499, %v498
        %v536 = vpack.c.b16 %v501, %v500
        %v537 = vpack.c.b16 %v503, %v502
        %v538 = vpack.c.b16 %v505, %v504
        %v539 = vpack.c.b16 %v507, %v506
        %v540 = vpack.c.b16 %v509, %v508
        %v541 = vpack.c.b16 %v511, %v510
        %v542 = vpack.c.b16 %v513, %v512
        %v543 = vpack.c.b16 %v514, %v514
        %vm572 = vcmask 547840
        %v574 = vsel %vm572, %v339, 0
        %vm576 = vcmask 1040384
        %vm577 = vcmask 1041408
        %v578 = vsel %vm576, 4294967295, 65535
        %v579 = vsel %vm577, %v578, 0
        %v581 = vand.u32 %v543, %v579
        %583 = vmatpush.bf16.msra.mxu0 %v522
        %584 = vmatpush.bf16.msra.mxu0 %v521
        %585 = vmatpush.bf16.msra.mxu0 %v520
        %586 = vmatpush.bf16.msra.mxu0 %v519
        %587 = vmatpush.bf16.msra.mxu0 %v518
        %588 = vmatpush.bf16.msra.mxu0 %v517
        %589 = vmatpush.bf16.msra.mxu0 %v516
        %590 = vmatpush.bf16.msra.mxu0 %v515
        %591 = vmatmul.bf16.gmra.mxu0 %v336
        %v592 = vpop.f32.mrf.mxu0
        %v593 = vadd.f32 %v399, %v592
        %v594 = vpop.f32.mrf.mxu0
        %595 = vdwg.mxu0
        %596 = vmatpush.bf16.msra.mxu0 %v530
        %597 = vmatpush.bf16.msra.mxu0 %v529
        %598 = vmatpush.bf16.msra.mxu0 %v528
        %599 = vmatpush.bf16.msra.mxu0 %v527
        %600 = vmatpush.bf16.msra.mxu0 %v526
        %601 = vmatpush.bf16.msra.mxu0 %v525
        %602 = vmatpush.bf16.msra.mxu0 %v524
        %603 = vmatpush.bf16.msra.mxu0 %v523
        %604 = vmatmul.bf16.gmra.mxu0 %v337
        %v605 = vpop.f32.mrf.mxu0
        %v606 = vadd.f32 %v593, %v605
        %v607 = vpop.f32.mrf.mxu0
        %608 = vdwg.mxu0
        %609 = vmatpush.bf16.msra.mxu0 %v538
        %610 = vmatpush.bf16.msra.mxu0 %v537
        %611 = vmatpush.bf16.msra.mxu0 %v536
        %612 = vmatpush.bf16.msra.mxu0 %v535
        %613 = vmatpush.bf16.msra.mxu0 %v534
        %614 = vmatpush.bf16.msra.mxu0 %v533
        %615 = vmatpush.bf16.msra.mxu0 %v532
        %616 = vmatpush.bf16.msra.mxu0 %v531
        %617 = vmatmul.bf16.gmra.mxu0 %v338
        %v618 = vpop.f32.mrf.mxu0
        %v619 = vadd.f32 %v606, %v618
        %v620 = vpop.f32.mrf.mxu0
        %621 = vdwg.mxu0
        %622 = vmatpush.bf16.msra.mxu0 0
        %623 = vmatpush.bf16.msra.mxu0 0
        %624 = vmatpush.bf16.msra.mxu0 0
        %625 = vmatpush.bf16.msra.mxu0 %v581
        %626 = vmatpush.bf16.msra.mxu0 %v542
        %627 = vmatpush.bf16.msra.mxu0 %v541
        %628 = vmatpush.bf16.msra.mxu0 %v540
        %629 = vmatpush.bf16.msra.mxu0 %v539
        %630 = vmatmul.bf16.gmra.mxu0 %v574
        %v631 = vpop.f32.mrf.mxu0
        %v632 = vadd.f32 %v619, %v631
        %v633 = vpop.f32.mrf.mxu0
        %634 = vdwg.mxu0
        %v635 = vmax.f32 %v632, 0.0
        %v636 = vpack.c.bf16 %v635, %v635
        %v637 = vld [vmem:[%s3] sm:$0xf]
        %v638 = vld [vmem:[%s3 + $0x4] sm:$0xf]
        %v639 = vld [vmem:[%s3 + $0x8] sm:$0xf]
        %v640 = vld [vmem:[%s3 + $0xc] sm:$0xf]
        %v641 = vld [vmem:[%s3 + $0x10] sm:$0xf]
        %v642 = vld [vmem:[%s3 + $0x14] sm:$0xf]
        %v643 = vld [vmem:[%s3 + $0x18] sm:$0xf]
        %v644 = vld [vmem:[%s3 + $0x1c] sm:$0xf]
        %v645 = vld [vmem:[%s4] sm:$0x1]
        %v647 = vperm.slane %v645, 0
        %v657 = vunpack.c.l.b16 %v637
        %v658 = vunpack.c.l.b16 %v638
        %v659 = vunpack.c.l.b16 %v639
        %v660 = vunpack.c.l.b16 %v640
        %v661 = vunpack.c.l.b16 %v641
        %v662 = vunpack.c.l.b16 %v642
        %v663 = vunpack.c.l.b16 %v643
        %v664 = vunpack.c.l.b16 %v644
        %v665 = vpack.c.b16 %v658, %v657
        %v666 = vpack.c.b16 %v660, %v659
        %v667 = vpack.c.b16 %v662, %v661
        %v668 = vpack.c.b16 %v664, %v663
        %vm673 = vcmask 523264
        %v675 = vsel %vm673, %v636, 0
        %677 = vmatpush.bf16.msra.mxu0 0
        %678 = vmatpush.bf16.msra.mxu0 0
        %679 = vmatpush.bf16.msra.mxu0 0
        %680 = vmatpush.bf16.msra.mxu0 0
        %681 = vmatpush.bf16.msra.mxu0 %v668
        %682 = vmatpush.bf16.msra.mxu0 %v667
        %683 = vmatpush.bf16.msra.mxu0 %v666
        %684 = vmatpush.bf16.msra.mxu0 %v665
        %685 = vmatmul.bf16.gmra.mxu0 %v675
        %v686 = vpop.f32.mrf.mxu0
        %v687 = vadd.f32 %v647, %v686
        %v688 = vpop.f32.mrf.mxu0
        %689 = vdwg.mxu0
        %v690 = vmax.f32 %v687, 0.0
        %v691 = vpack.c.bf16 %v690, %v690
        %v692 = vld [vmem:[%s5] sm:$0xff]
        %v693 = vld [vmem:[%s5 + $0x8] sm:$0xff]
        %v694 = vld [vmem:[%s5 + $0x10] sm:$0xff]
        %v695 = vld [vmem:[%s5 + $0x18] sm:$0xff]
        %v696 = vld [vmem:[%s5 + $0x20] sm:$0xff]
        %v697 = vld [vmem:[%s5 + $0x28] sm:$0xff]
        %v698 = vld [vmem:[%s5 + $0x30] sm:$0xff]
        %v699 = vld [vmem:[%s5 + $0x38] sm:$0xff]
        %v700 = vld [vmem:[%s5 + $0x40] sm:$0xff]
        %v701 = vld [vmem:[%s5 + $0x48] sm:$0xff]
        %v702 = vld [vmem:[%s5 + $0x50] sm:$0xff]
        %v703 = vld [vmem:[%s5 + $0x58] sm:$0xff]
        %v704 = vld [vmem:[%s5 + $0x60] sm:$0xff]
        %v705 = vld [vmem:[%s5 + $0x68] sm:$0xff]
        %v706 = vld [vmem:[%s5 + $0x70] sm:$0xff]
        %v707 = vld [vmem:[%s5 + $0x78] sm:$0xff]
        %v708 = vld [vmem:[%s6] sm:$0x3]
        %v710 = vperm.slane %v708, 0
        %v711 = vperm.slane %v708, 1
        %v730 = vunpack.c.l.b16 %v692
        %v731 = vunpack.c.h.b16 %v692
        %v732 = vunpack.c.l.b16 %v693
        %v733 = vunpack.c.h.b16 %v693
        %v734 = vunpack.c.l.b16 %v694
        %v735 = vunpack.c.h.b16 %v694
        %v736 = vunpack.c.l.b16 %v695
        %v737 = vunpack.c.h.b16 %v695
        %v738 = vunpack.c.l.b16 %v696
        %v739 = vunpack.c.h.b16 %v696
        %v740 = vunpack.c.l.b16 %v697
        %v741 = vunpack.c.h.b16 %v697
        %v742 = vunpack.c.l.b16 %v698
        %v743 = vunpack.c.h.b16 %v698
        %v744 = vunpack.c.l.b16 %v699
        %v745 = vunpack.c.h.b16 %v699
        %v746 = vunpack.c.l.b16 %v700
        %v747 = vunpack.c.h.b16 %v700
        %v748 = vunpack.c.l.b16 %v701
        %v749 = vunpack.c.h.b16 %v701
        %v750 = vunpack.c.l.b16 %v702
        %v751 = vunpack.c.h.b16 %v702
        %v752 = vunpack.c.l.b16 %v703
        %v753 = vunpack.c.h.b16 %v703
        %v754 = vunpack.c.l.b16 %v704
        %v755 = vunpack.c.h.b16 %v704
        %v756 = vunpack.c.l.b16 %v705
        %v757 = vunpack.c.h.b16 %v705
        %v758 = vunpack.c.l.b16 %v706
        %v759 = vunpack.c.h.b16 %v706
        %v760 = vunpack.c.l.b16 %v707
        %v761 = vunpack.c.h.b16 %v707
        %v762 = vpack.c.b16 %v732, %v730
        %v763 = vpack.c.b16 %v733, %v731
        %v764 = vpack.c.b16 %v736, %v734
        %v765 = vpack.c.b16 %v737, %v735
        %v766 = vpack.c.b16 %v740, %v738
        %v767 = vpack.c.b16 %v741, %v739
        %v768 = vpack.c.b16 %v744, %v742
        %v769 = vpack.c.b16 %v745, %v743
        %v770 = vpack.c.b16 %v748, %v746
        %v771 = vpack.c.b16 %v749, %v747
        %v772 = vpack.c.b16 %v752, %v750
        %v773 = vpack.c.b16 %v753, %v751
        %v774 = vpack.c.b16 %v756, %v754
        %v775 = vpack.c.b16 %v757, %v755
        %v776 = vpack.c.b16 %v760, %v758
        %v777 = vpack.c.b16 %v761, %v759
        %794 = vmatpush.bf16.msra.mxu0 %v776
        %795 = vmatpush.bf16.msra.mxu0 %v774
        %796 = vmatpush.bf16.msra.mxu0 %v772
        %797 = vmatpush.bf16.msra.mxu0 %v770
        %798 = vmatpush.bf16.msra.mxu0 %v768
        %799 = vmatpush.bf16.msra.mxu0 %v766
        %800 = vmatpush.bf16.msra.mxu0 %v764
        %801 = vmatpush.bf16.msra.mxu0 %v762
        %802 = vmatmul.bf16.gmra.mxu0 %v691
        %v803 = vpop.f32.mrf.mxu0
        %v804 = vadd.f32 %v710, %v803
        %v805 = vpop.f32.mrf.mxu0
        %806 = vdwg.mxu0
        %807 = vmatpush.bf16.msra.mxu0 %v777
        %808 = vmatpush.bf16.msra.mxu0 %v775
        %809 = vmatpush.bf16.msra.mxu0 %v773
        %810 = vmatpush.bf16.msra.mxu0 %v771
        %811 = vmatpush.bf16.msra.mxu0 %v769
        %812 = vmatpush.bf16.msra.mxu0 %v767
        %813 = vmatpush.bf16.msra.mxu0 %v765
        %814 = vmatpush.bf16.msra.mxu0 %v763
        %815 = vmatmul.bf16.gmra.mxu0 %v691
        %v816 = vpop.f32.mrf.mxu0
        %v817 = vadd.f32 %v711, %v816
        %v818 = vpop.f32.mrf.mxu0
        %819 = vdwg.mxu0
        %v820 = vmax.f32 %v804, 0.0
        %v821 = vmax.f32 %v817, 0.0
        %v822 = vpack.c.bf16 %v820, %v820
        %v823 = vpack.c.bf16 %v821, %v821
        %v824 = vld [vmem:[%s7] sm:$0xf]
        %v825 = vld [vmem:[%s7 + $0x4] sm:$0xf]
        %v826 = vld [vmem:[%s7 + $0x8] sm:$0xf]
        %v827 = vld [vmem:[%s7 + $0xc] sm:$0xf]
        %v828 = vld [vmem:[%s7 + $0x10] sm:$0xf]
        %v829 = vld [vmem:[%s7 + $0x14] sm:$0xf]
        %v830 = vld [vmem:[%s7 + $0x18] sm:$0xf]
        %v831 = vld [vmem:[%s7 + $0x1c] sm:$0xf]
        %v832 = vld [vmem:[%s7 + $0x20] sm:$0xf]
        %v833 = vld [vmem:[%s7 + $0x24] sm:$0xf]
        %v834 = vld [vmem:[%s7 + $0x28] sm:$0xf]
        %v835 = vld [vmem:[%s7 + $0x2c] sm:$0xf]
        %v836 = vld [vmem:[%s7 + $0x30] sm:$0xf]
        %v837 = vld [vmem:[%s7 + $0x34] sm:$0xf]
        %v838 = vld [vmem:[%s7 + $0x38] sm:$0xf]
        %v839 = vld [vmem:[%s7 + $0x3c] sm:$0xf]
        %v840 = vld [vmem:[%s7 + $0x40] sm:$0xf]
        %v841 = vld [vmem:[%s7 + $0x44] sm:$0xf]
        %v842 = vld [vmem:[%s7 + $0x48] sm:$0xf]
        %v843 = vld [vmem:[%s7 + $0x4c] sm:$0xf]
        %v844 = vld [vmem:[%s7 + $0x50] sm:$0xf]
        %v845 = vld [vmem:[%s7 + $0x54] sm:$0xf]
        %v846 = vld [vmem:[%s7 + $0x58] sm:$0xf]
        %v847 = vld [vmem:[%s7 + $0x5c] sm:$0xf]
        %v848 = vld [vmem:[%s7 + $0x60] sm:$0xf]
        %v849 = vld [vmem:[%s7 + $0x64] sm:$0xf]
        %v850 = vld [vmem:[%s7 + $0x68] sm:$0xf]
        %v851 = vld [vmem:[%s7 + $0x6c] sm:$0xf]
        %v852 = vld [vmem:[%s7 + $0x70] sm:$0xf]
        %v853 = vld [vmem:[%s7 + $0x74] sm:$0xf]
        %v854 = vld [vmem:[%s7 + $0x78] sm:$0xf]
        %v855 = vld [vmem:[%s7 + $0x7c] sm:$0xf]
        %v856 = vld [vmem:[%s8] sm:$0x1]
        %v858 = vperm.slane %v856, 0
        %v892 = vunpack.c.l.b16 %v824
        %v893 = vunpack.c.l.b16 %v825
        %v894 = vunpack.c.l.b16 %v826
        %v895 = vunpack.c.l.b16 %v827
        %v896 = vunpack.c.l.b16 %v828
        %v897 = vunpack.c.l.b16 %v829
        %v898 = vunpack.c.l.b16 %v830
        %v899 = vunpack.c.l.b16 %v831
        %v900 = vunpack.c.l.b16 %v832
        %v901 = vunpack.c.l.b16 %v833
        %v902 = vunpack.c.l.b16 %v834
        %v903 = vunpack.c.l.b16 %v835
        %v904 = vunpack.c.l.b16 %v836
        %v905 = vunpack.c.l.b16 %v837
        %v906 = vunpack.c.l.b16 %v838
        %v907 = vunpack.c.l.b16 %v839
        %v908 = vunpack.c.l.b16 %v840
        %v909 = vunpack.c.l.b16 %v841
        %v910 = vunpack.c.l.b16 %v842
        %v911 = vunpack.c.l.b16 %v843
        %v912 = vunpack.c.l.b16 %v844
        %v913 = vunpack.c.l.b16 %v845
        %v914 = vunpack.c.l.b16 %v846
        %v915 = vunpack.c.l.b16 %v847
        %v916 = vunpack.c.l.b16 %v848
        %v917 = vunpack.c.l.b16 %v849
        %v918 = vunpack.c.l.b16 %v850
        %v919 = vunpack.c.l.b16 %v851
        %v920 = vunpack.c.l.b16 %v852
        %v921 = vunpack.c.l.b16 %v853
        %v922 = vunpack.c.l.b16 %v854
        %v923 = vunpack.c.l.b16 %v855
        %v924 = vpack.c.b16 %v893, %v892
        %v925 = vpack.c.b16 %v895, %v894
        %v926 = vpack.c.b16 %v897, %v896
        %v927 = vpack.c.b16 %v899, %v898
        %v928 = vpack.c.b16 %v901, %v900
        %v929 = vpack.c.b16 %v903, %v902
        %v930 = vpack.c.b16 %v905, %v904
        %v931 = vpack.c.b16 %v907, %v906
        %v932 = vpack.c.b16 %v909, %v908
        %v933 = vpack.c.b16 %v911, %v910
        %v934 = vpack.c.b16 %v913, %v912
        %v935 = vpack.c.b16 %v915, %v914
        %v936 = vpack.c.b16 %v917, %v916
        %v937 = vpack.c.b16 %v919, %v918
        %v938 = vpack.c.b16 %v921, %v920
        %v939 = vpack.c.b16 %v923, %v922
        %956 = vmatpush.bf16.msra.mxu0 %v931
        %957 = vmatpush.bf16.msra.mxu0 %v930
        %958 = vmatpush.bf16.msra.mxu0 %v929
        %959 = vmatpush.bf16.msra.mxu0 %v928
        %960 = vmatpush.bf16.msra.mxu0 %v927
        %961 = vmatpush.bf16.msra.mxu0 %v926
        %962 = vmatpush.bf16.msra.mxu0 %v925
        %963 = vmatpush.bf16.msra.mxu0 %v924
        %964 = vmatmul.bf16.gmra.mxu0 %v822
        %v965 = vpop.f32.mrf.mxu0
        %v966 = vadd.f32 %v858, %v965
        %v967 = vpop.f32.mrf.mxu0
        %968 = vdwg.mxu0
        %969 = vmatpush.bf16.msra.mxu0 %v939
        %970 = vmatpush.bf16.msra.mxu0 %v938
        %971 = vmatpush.bf16.msra.mxu0 %v937
        %972 = vmatpush.bf16.msra.mxu0 %v936
        %973 = vmatpush.bf16.msra.mxu0 %v935
        %974 = vmatpush.bf16.msra.mxu0 %v934
        %975 = vmatpush.bf16.msra.mxu0 %v933
        %976 = vmatpush.bf16.msra.mxu0 %v932
        %977 = vmatmul.bf16.gmra.mxu0 %v823
        %v978 = vpop.f32.mrf.mxu0
        %v979 = vadd.f32 %v966, %v978
        %v980 = vpop.f32.mrf.mxu0
        %981 = vdwg.mxu0
        %v982 = vpack.c.bf16 %v979, %v979
        %983 = vst [vmem:[%s325] sm:$0xf] %v982
        %s984 = sand.u32 %s225, 1
        %s985 = scalar_lea.sflag [#allocation3], %s984
        %s986 = sand.u32 %s225, 1
        %s987 = smul.addr %s986, 4
        %s988 = scalar_lea.vmem [#allocation2], %s987
        // Predicated region
        $region57: #{tpu_custom_call.1} parent=55 // pred_check
          %p989 = pneg %p235
        $region58: #{tpu_custom_call.1} parent=55 // pred_check_branch
          %991 = sbr.rel (%p989) target = $region60
        $region59: #{tpu_custom_call.1} parent=55 // pred_region
          %993 = vsyncadd %s985, 0
          %s994 = smul.addr %s23, 4
          %s995 = scalar_lea.hbm %s9, %s994
          %s997 = sshll.u32 %s988, 4
          %s998 = int_to_ptr.vmem [resolvable:$true] %s997
          %s999 = sshll.u32 %s995, 4
          %s1000 = int_to_ptr.hbm [resolvable:$true] %s999
          %1002 = dma.vmem_to_hbm [thread:$0]  %s998, 64, %s1000, %s985
        $region60: #{tpu_custom_call.1} parent=55 // pred_fallthru
          _
      $region56: #{tpu_custom_call.1} parent=5 // pred_fallthru
        _
      %p1003 = scmp.le.s32.totalorder 2, %s18
      // Predicated region
      $region61: #{tpu_custom_call.1} parent=5 // pred_check
        %p1004 = pneg %p1003
      $region62: #{tpu_custom_call.1} parent=5 // pred_check_branch
        %1006 = sbr.rel (%p1004) target = $region64
      $region63: #{tpu_custom_call.1} parent=5 // pred_region
        %s1007 = ssub.s32 %s18, 2
        // Predicated region
        $region65: #{tpu_custom_call.1} parent=63 // pred_check
          %p1008 = pneg %p241
        $region66: #{tpu_custom_call.1} parent=63 // pred_check_branch
          %1010 = sbr.rel (%p1008) target = $region68
        $region67: #{tpu_custom_call.1} parent=63 // pred_region
          %s1011 = sand.u32 %s226, 1
          %s1012 = scalar_lea.sflag [#allocation3], %s1011
          %s1013 = sand.u32 %s226, 1
          %s1014 = smul.addr %s1013, 4
          %s1015 = scalar_lea.vmem [#allocation2], %s1014
          %1017 = dma.done %s1012, 64
        $region68: #{tpu_custom_call.1} parent=63 // pred_fallthru
          _
      $region64: #{tpu_custom_call.1} parent=5 // pred_fallthru
        _
    $region6: #{tpu_custom_call.1} parent=1 // loop_footer
      %s22 = sadd.s32 1, %s18
    $region7: #{tpu_custom_call.1} parent=1 // loop_footer_branch
      %17 = sbr.rel target = $region3
    $region8: #{tpu_custom_call.1} parent=1 // loop_exit
      _
    %1018 = vsyncpa [#allocation3], 1
    %s1019 = scalar_lea.sflag [#allocation3], 1
    %1020 = vsyncpa %s1019, 1

</llo_original>
